<compile_context>
chip_gen: v7x
topology: tpu7x:2x2x1
jax: 0.10.0
libtpu: 0.0.40
codegen_flags: <defaults>
</compile_context>

<pallas_src>
import functools

import jax
import jax.numpy as jnp
from jax import lax
from jax.experimental import pallas as pl
from jax.experimental.pallas import tpu as pltpu  # noqa: F401  (no TPU-specific params needed at this footprint)

# ----------------------------- problem sizes --------------------------------
B = 2        # batch
N = 8        # nodes per graph
F_IN = 32    # input node-feature dim
HIDDEN = 32  # gat / predictor hidden dim
VOCAB = 16   # vocab size (linear1 of MaskPredict -- unused in forward)

NEG_INF = -1e9


# ------------------------------- fused kernel -------------------------------
def molgraph2_fused_kernel(x_ref, adj_ref, w_ref, aw_ref, b_ref,
                           o12_ref, o3_ref, *, n_graphs, n_nodes):
    """Whole MolGraph2 forward on a block-diagonalized (2B*N, *) problem."""
    gn, f_in = x_ref.shape           # gn = 2B*N stacked nodes
    h = w_ref.shape[1]

    # --- static weight views (all slices start at sublane multiples of 8) ----
    gw = w_ref[0:f_in, :]            # (F, H)   GAT node projection
    w2 = w_ref[f_in:f_in + h, :]     # (H, H)   folded MaskPredict  W.T @ W.T
    ga = aw_ref[0:h, :]              # (H, 2)   [a_src | a_dst]
    nwf = aw_ref[h:3 * h, :]         # (2H, 2)  folded NextPredict  Wn.T @ W1.T
    mb2 = b_ref[0:1, :]              # (1, H)   folded MaskPredict bias
    nb2 = b_ref[1:2, 0:2]            # (1, 2)   folded NextPredict bias

    # ------------------------ GAT (block-diagonal) ---------------------------
    h_flat = jnp.dot(x_ref[...], gw, preferred_element_type=jnp.float32)   # (GN, H)
    fsd = jnp.dot(h_flat, ga, preferred_element_type=jnp.float32)          # (GN, 2)

    # e[i, j] = f_src[i] + f_dst[j] in ONE tiny MXU contraction:
    #   m_src[i] = [f_src[i], 1],  m_dst[j] = [1, f_dst[j]],
    #   e = m_src . m_dst^T  (contraction over the size-2 axis).
    lane = lax.broadcasted_iota(jnp.int32, (1, 2), 1)
    c_src = (lane == 0).astype(jnp.float32)          # [[1, 0]]
    c_dst = (lane == 1).astype(jnp.float32)          # [[0, 1]]
    m_src = fsd * c_src + c_dst                      # (GN, 2) = [f_src | 1]
    m_dst = fsd * c_dst + c_src                      # (GN, 2) = [1 | f_dst]
    e = lax.dot_general(m_src, m_dst, (((1,), (1,)), ((), ())),
                        preferred_element_type=jnp.float32)                # (GN, GN)

    e = jnp.where(e > 0, e, 0.2 * e)                 # LeakyReLU(0.2)
    # Block-diagonal adj: non-edges AND cross-graph pairs are masked, so the
    # row softmax stays per-graph.  Self-loops guarantee >=1 unmasked entry.
    e = jnp.where(adj_ref[...] > 0, e, NEG_INF)
    e = e - jnp.max(e, axis=-1, keepdims=True)
    p = jnp.exp(e)
    attn = p / jnp.sum(p, axis=-1, keepdims=True)    # exact softmax (no approx recip)

    out = jnp.dot(attn, h_flat, preferred_element_type=jnp.float32)        # (GN, H)
    # ELU -- exp only evaluated on the clamped (non-positive) branch
    xg = jnp.where(out > 0, out, jnp.exp(jnp.minimum(out, 0.0)) - 1.0)

    # ------------------ MaskPredict (double linear pre-folded) ---------------
    y = jnp.dot(xg, w2, preferred_element_type=jnp.float32) + mb2
    z = y - jnp.max(y, axis=-1, keepdims=True)
    o12_ref[...] = z - jnp.log(jnp.sum(jnp.exp(z), axis=-1, keepdims=True))  # (GN, H)

    # ------------------ NextPredict (double linear pre-folded) ---------------
    # Per-graph node sums (cheap XLU reduction; keep off the MXU chain).
    s = jnp.sum(xg.reshape(n_graphs, n_nodes, h), axis=1)                   # (2B, H)
    b_half = n_graphs // 2
    s12 = jnp.concatenate([s[0:b_half, :], s[b_half:, :]], axis=1)          # (B, 2H)
    y2 = jnp.dot(s12, nwf, preferred_element_type=jnp.float32) + nb2        # (B, 2)
    z2 = y2 - jnp.max(y2, axis=-1, keepdims=True)
    o3_ref[...] = z2 - jnp.log(jnp.sum(jnp.exp(z2), axis=-1, keepdims=True))


# ------------------------------- wrapper -------------------------------------
@jax.jit
def molgraph2_forward(x1, x2, adj1, adj2, params):
    b, n, f = x1.shape
    g = params["gat"]
    m = params["out1"]
    nx = params["out2"]
    h = g["w"].shape[1]
    HI = jax.lax.Precision.HIGHEST

    # Stack both graphs of both batch elements -> one flattened (2B*N, F) slab.
    x_flat = jnp.concatenate([x1, x2], axis=0).reshape(2 * b * n, f)
    # Block-diagonal adjacency so the per-graph softmax cannot leak across graphs.
    adj_all = jnp.concatenate([adj1, adj2], axis=0)                    # (2B, N, N)
    adj_bd = jax.scipy.linalg.block_diag(*[adj_all[i] for i in range(2 * b)])

    # Fold the repeated linears wrapper-side (off the kernel critical path),
    # at highest precision so the folding itself adds no visible rounding.
    mw_t = m["w"].T
    w2 = jnp.dot(mw_t, mw_t, precision=HI)                             # (H, H)
    b2 = jnp.dot(m["b"], mw_t, precision=HI) + m["b"]                  # (1, H)
    nw_fold = jnp.dot(nx["w"].T, nx["w1"].T, precision=HI)             # (2H, 2)
    nb_fold = jnp.dot(nx["b"], nx["w1"].T, precision=HI) + nx["b1"]    # (1, 2)

    # Consolidate operands: 5 DMAs instead of 11 tiny ones.
    w_stack = jnp.concatenate([g["w"], w2], axis=0)                    # (F+H, H)
    ga = jnp.concatenate([g["a_src"], g["a_dst"]], axis=1)             # (H, 2)
    aw_stack = jnp.concatenate([ga, nw_fold], axis=0)                  # (3H, 2)
    bias_stack = jnp.concatenate(
        [b2, jnp.pad(nb_fold, ((0, 0), (0, h - nb_fold.shape[1])))], axis=0)  # (2, H)

    o12, o3 = pl.pallas_call(
        functools.partial(molgraph2_fused_kernel, n_graphs=2 * b, n_nodes=n),
        out_shape=(jax.ShapeDtypeStruct((2 * b * n, h), jnp.float32),
                   jax.ShapeDtypeStruct((b, 2), jnp.float32)),
    )(x_flat, adj_bd, w_stack, aw_stack, bias_stack)

    o12 = o12.reshape(2 * b, n, h)
    return o12[:b], o12[b:], o3


# ------------------------------ param init -----------------------------------
def _uniform(key, shape, fan_in):
    bound = 1.0 / jnp.sqrt(float(fan_in))
    return jax.random.uniform(key, shape, jnp.float32, -bound, bound)


def init_params(key):
    ks = jax.random.split(key, 12)
    params = {
        "gat": {
            "w": _uniform(ks[0], (F_IN, HIDDEN), F_IN),
            "a_src": _uniform(ks[1], (HIDDEN, 1), HIDDEN),
            "a_dst": _uniform(ks[2], (HIDDEN, 1), HIDDEN),
        },
        "out1": {  # MaskPredict.linear (hidden -> hidden); linear1 unused in forward
            "w": _uniform(ks[3], (HIDDEN, HIDDEN), HIDDEN),
            "b": _uniform(ks[4], (1, HIDDEN), HIDDEN),
            "w1_unused": _uniform(ks[5], (VOCAB, HIDDEN), HIDDEN),
            "b1_unused": _uniform(ks[6], (1, VOCAB), HIDDEN),
        },
        "out2": {  # NextPredict
            "w": _uniform(ks[7], (HIDDEN, 2 * HIDDEN), 2 * HIDDEN),
            "b": _uniform(ks[8], (1, HIDDEN), 2 * HIDDEN),
            "w1": _uniform(ks[9], (2, HIDDEN), HIDDEN),
            "b1": _uniform(ks[10], (1, 2), HIDDEN),
        },
    }
    return params


# --------------------------- pure-JAX reference -------------------------------
def reference_forward(x1, x2, adj1, adj2, params):
    g = params["gat"]

    def gat(x, adj):
        hh = x @ g["w"]
        f_src = hh @ g["a_src"]                               # (B, N, 1)
        f_dst = hh @ g["a_dst"]                               # (B, N, 1)
        e = f_src + jnp.swapaxes(f_dst, -1, -2)
        e = jnp.where(e > 0, e, 0.2 * e)
        e = jnp.where(adj > 0, e, NEG_INF)
        attn = jax.nn.softmax(e, axis=-1)
        out = attn @ hh
        return jnp.where(out > 0, out, jnp.expm1(jnp.minimum(out, 0.0)))

    def mask_predict(x):
        m = params["out1"]
        y = x @ m["w"].T + m["b"]
        y = y @ m["w"].T + m["b"]
        return jax.nn.log_softmax(y, axis=-1)

    x1g = gat(x1, adj1)
    x2g = gat(x2, adj2)
    nx = params["out2"]
    cat = jnp.concatenate([jnp.sum(x1g, 1), jnp.sum(x2g, 1)], axis=1)
    y = cat @ nx["w"].T + nx["b"]
    y = y @ nx["w1"].T + nx["b1"]
    return mask_predict(x1g), mask_predict(x2g), jax.nn.log_softmax(y, axis=-1)


# --------------------------------- main --------------------------------------
if __name__ == "__main__":
    key = jax.random.PRNGKey(0)
    k_x1, k_x2, k_a1, k_a2, k_p = jax.random.split(key, 5)

    x1 = jax.random.normal(k_x1, (B, N, F_IN), jnp.float32)
    x2 = jax.random.normal(k_x2, (B, N, F_IN), jnp.float32)

    # random undirected adjacency with self-loops (float 0/1)
    def make_adj(k):
        a = (jax.random.uniform(k, (B, N, N)) > 0.5).astype(jnp.float32)
        a = jnp.maximum(a, jnp.transpose(a, (0, 2, 1)))
        eye = jnp.eye(N, dtype=jnp.float32)[None]
        return jnp.maximum(a, eye)

    adj1 = make_adj(k_a1)
    adj2 = make_adj(k_a2)

    params = init_params(k_p)

    o1, o2, o3 = molgraph2_forward(x1, x2, adj1, adj2, params)
    jax.block_until_ready((o1, o2, o3))

    assert o1.shape == (B, N, HIDDEN)
    assert o2.shape == (B, N, HIDDEN)
    assert o3.shape == (B, 2)
    # log_softmax rows must sum (in prob space) to ~1
    assert jnp.allclose(jnp.sum(jnp.exp(o1), axis=-1), 1.0, atol=1e-4)
    assert jnp.allclose(jnp.sum(jnp.exp(o2), axis=-1), 1.0, atol=1e-4)
    assert jnp.allclose(jnp.sum(jnp.exp(o3), axis=-1), 1.0, atol=1e-4)

    # Compare against a full-f32 reference.  Exact softmax division (no approx
    # reciprocal) + highest-precision weight folding lets the tolerance drop
    # from 0.1 to 1e-3; residual diff is only matmul rounding/association.
    with jax.default_matmul_precision("float32"):
        r1, r2, r3 = reference_forward(x1, x2, adj1, adj2, params)
    assert jnp.allclose(o1, r1, atol=1e-3), float(jnp.max(jnp.abs(o1 - r1)))
    assert jnp.allclose(o2, r2, atol=1e-3), float(jnp.max(jnp.abs(o2 - r2)))
    assert jnp.allclose(o3, r3, atol=1e-3), float(jnp.max(jnp.abs(o3 - r3)))

    print("KERNEL_OK")
</pallas_src>

<mosaic_0001>
module attributes {stable_mosaic.version = 11 : i64} {
  func.func @molgraph2_fused_kernel(%arg0: memref<32x32xf32, #tpu.memory_space<vmem>>, %arg1: memref<32x32xf32, #tpu.memory_space<vmem>>, %arg2: memref<64x32xf32, #tpu.memory_space<vmem>>, %arg3: memref<96x2xf32, #tpu.memory_space<vmem>>, %arg4: memref<2x32xf32, #tpu.memory_space<vmem>>, %arg5: memref<32x32xf32, #tpu.memory_space<vmem>>, %arg6: memref<2x2xf32, #tpu.memory_space<vmem>>) attributes {dimension_semantics = [], scalar_prefetch = 0 : i64, scratch_operands = 0 : i64, tpu.core_type = #tpu.core_type<tc>} {
    %c0 = arith.constant 0 : index
    %c0_0 = arith.constant 0 : index
    %0 = vector.load %arg2[%c0, %c0_0] : memref<64x32xf32, #tpu.memory_space<vmem>>, vector<32x32xf32>
    %c32 = arith.constant 32 : index
    %c0_1 = arith.constant 0 : index
    %1 = vector.load %arg2[%c32, %c0_1] : memref<64x32xf32, #tpu.memory_space<vmem>>, vector<32x32xf32>
    %c0_2 = arith.constant 0 : index
    %c0_3 = arith.constant 0 : index
    %2 = vector.load %arg3[%c0_2, %c0_3] : memref<96x2xf32, #tpu.memory_space<vmem>>, vector<32x2xf32>
    %c32_4 = arith.constant 32 : index
    %c0_5 = arith.constant 0 : index
    %3 = vector.load %arg3[%c32_4, %c0_5] : memref<96x2xf32, #tpu.memory_space<vmem>>, vector<64x2xf32>
    %c0_6 = arith.constant 0 : index
    %c0_7 = arith.constant 0 : index
    %4 = vector.load %arg4[%c0_6, %c0_7] : memref<2x32xf32, #tpu.memory_space<vmem>>, vector<1x32xf32>
    %c1 = arith.constant 1 : index
    %c0_8 = arith.constant 0 : index
    %5 = vector.load %arg4[%c1, %c0_8] : memref<2x32xf32, #tpu.memory_space<vmem>>, vector<1x2xf32>
    %c0_9 = arith.constant 0 : index
    %c0_10 = arith.constant 0 : index
    %6 = vector.load %arg0[%c0_9, %c0_10] : memref<32x32xf32, #tpu.memory_space<vmem>>, vector<32x32xf32>
    %cst = arith.constant dense<0.000000e+00> : vector<32x32xf32>
    %7 = tpu.matmul %6, %0, %cst {dimension_numbers = #tpu.dot_dimension_numbers<[1], [0], [0], [1], [0, 0, 1, 1], [], []>} : vector<32x32xf32>, vector<32x32xf32>, vector<32x32xf32> -> vector<32x32xf32>
    %cst_11 = arith.constant dense<0.000000e+00> : vector<32x2xf32>
    %8 = tpu.matmul %7, %2, %cst_11 {dimension_numbers = #tpu.dot_dimension_numbers<[1], [0], [0], [1], [0, 0, 1, 1], [], []>} : vector<32x32xf32>, vector<32x2xf32>, vector<32x2xf32> -> vector<32x2xf32>
    %9 = tpu.iota {dimensions = array<i32: 1>} : vector<1x2xi32>
    %c0_i32 = arith.constant 0 : i32
    %10 = vector.broadcast %c0_i32 : i32 to vector<1x2xi32>
    %11 = arith.cmpi eq, %9, %10 : vector<1x2xi32>
    %12 = arith.extui %11 : vector<1x2xi1> to vector<1x2xi32>
    %13 = arith.sitofp %12 : vector<1x2xi32> to vector<1x2xf32>
    %c1_i32 = arith.constant 1 : i32
    %14 = vector.broadcast %c1_i32 : i32 to vector<1x2xi32>
    %15 = arith.cmpi eq, %9, %14 : vector<1x2xi32>
    %16 = arith.extui %15 : vector<1x2xi1> to vector<1x2xi32>
    %17 = arith.sitofp %16 : vector<1x2xi32> to vector<1x2xf32>
    %18 = vector.broadcast %13 : vector<1x2xf32> to vector<32x2xf32>
    %19 = arith.mulf %8, %18 : vector<32x2xf32>
    %20 = vector.broadcast %17 : vector<1x2xf32> to vector<32x2xf32>
    %21 = arith.addf %19, %20 : vector<32x2xf32>
    %22 = vector.broadcast %17 : vector<1x2xf32> to vector<32x2xf32>
    %23 = arith.mulf %8, %22 : vector<32x2xf32>
    %24 = vector.broadcast %13 : vector<1x2xf32> to vector<32x2xf32>
    %25 = arith.addf %23, %24 : vector<32x2xf32>
    %cst_12 = arith.constant dense<0.000000e+00> : vector<32x32xf32>
    %26 = tpu.matmul %21, %25, %cst_12 {dimension_numbers = #tpu.dot_dimension_numbers<[1], [1], [0], [0], [0, 0, 1, 0], [], []>} : vector<32x2xf32>, vector<32x2xf32>, vector<32x32xf32> -> vector<32x32xf32>
    %cst_13 = arith.constant 0.000000e+00 : f32
    %27 = vector.broadcast %cst_13 : f32 to vector<32x32xf32>
    %28 = arith.cmpf ogt, %26, %27 : vector<32x32xf32>
    %cst_14 = arith.constant 2.000000e-01 : f32
    %29 = vector.broadcast %cst_14 : f32 to vector<32x32xf32>
    %30 = arith.mulf %29, %26 : vector<32x32xf32>
    %31 = arith.select %28, %26, %30 : vector<32x32xi1>, vector<32x32xf32>
    %c0_15 = arith.constant 0 : index
    %c0_16 = arith.constant 0 : index
    %32 = vector.load %arg1[%c0_15, %c0_16] : memref<32x32xf32, #tpu.memory_space<vmem>>, vector<32x32xf32>
    %cst_17 = arith.constant 0.000000e+00 : f32
    %33 = vector.broadcast %cst_17 : f32 to vector<32x32xf32>
    %34 = arith.cmpf ogt, %32, %33 : vector<32x32xf32>
    %cst_18 = arith.constant -1.000000e+09 : f32
    %35 = vector.broadcast %cst_18 : f32 to vector<32x32xf32>
    %36 = arith.select %34, %31, %35 : vector<32x32xi1>, vector<32x32xf32>
    %cst_19 = arith.constant dense<0xFF800000> : vector<32xf32>
    %37 = vector.multi_reduction <maximumf>, %36, %cst_19 [1] : vector<32x32xf32> to vector<32xf32>
    %38 = vector.shape_cast %37 : vector<32xf32> to vector<32x1xf32>
    %39 = vector.broadcast %38 : vector<32x1xf32> to vector<32x32xf32>
    %40 = arith.subf %36, %39 : vector<32x32xf32>
    %41 = math.exp %40 : vector<32x32xf32>
    %cst_20 = arith.constant dense<0.000000e+00> : vector<32xf32>
    %42 = vector.multi_reduction <add>, %41, %cst_20 [1] : vector<32x32xf32> to vector<32xf32>
    %43 = vector.shape_cast %42 : vector<32xf32> to vector<32x1xf32>
    %44 = vector.broadcast %43 : vector<32x1xf32> to vector<32x32xf32>
    %45 = arith.divf %41, %44 : vector<32x32xf32>
    %cst_21 = arith.constant dense<0.000000e+00> : vector<32x32xf32>
    %46 = tpu.matmul %45, %7, %cst_21 {dimension_numbers = #tpu.dot_dimension_numbers<[1], [0], [0], [1], [0, 0, 1, 1], [], []>} : vector<32x32xf32>, vector<32x32xf32>, vector<32x32xf32> -> vector<32x32xf32>
    %cst_22 = arith.constant 0.000000e+00 : f32
    %47 = vector.broadcast %cst_22 : f32 to vector<32x32xf32>
    %48 = arith.cmpf ogt, %46, %47 : vector<32x32xf32>
    %cst_23 = arith.constant 0.000000e+00 : f32
    %49 = vector.broadcast %cst_23 : f32 to vector<32x32xf32>
    %50 = arith.minimumf %46, %49 : vector<32x32xf32>
    %51 = math.exp %50 : vector<32x32xf32>
    %cst_24 = arith.constant 1.000000e+00 : f32
    %52 = vector.broadcast %cst_24 : f32 to vector<32x32xf32>
    %53 = arith.subf %51, %52 : vector<32x32xf32>
    %54 = arith.select %48, %46, %53 : vector<32x32xi1>, vector<32x32xf32>
    %cst_25 = arith.constant dense<0.000000e+00> : vector<32x32xf32>
    %55 = tpu.matmul %54, %1, %cst_25 {dimension_numbers = #tpu.dot_dimension_numbers<[1], [0], [0], [1], [0, 0, 1, 1], [], []>} : vector<32x32xf32>, vector<32x32xf32>, vector<32x32xf32> -> vector<32x32xf32>
    %56 = vector.broadcast %4 : vector<1x32xf32> to vector<32x32xf32>
    %57 = arith.addf %55, %56 : vector<32x32xf32>
    %cst_26 = arith.constant dense<0xFF800000> : vector<32xf32>
    %58 = vector.multi_reduction <maximumf>, %57, %cst_26 [1] : vector<32x32xf32> to vector<32xf32>
    %59 = vector.shape_cast %58 : vector<32xf32> to vector<32x1xf32>
    %60 = vector.broadcast %59 : vector<32x1xf32> to vector<32x32xf32>
    %61 = arith.subf %57, %60 : vector<32x32xf32>
    %62 = math.exp %61 : vector<32x32xf32>
    %cst_27 = arith.constant dense<0.000000e+00> : vector<32xf32>
    %63 = vector.multi_reduction <add>, %62, %cst_27 [1] : vector<32x32xf32> to vector<32xf32>
    %64 = vector.shape_cast %63 : vector<32xf32> to vector<32x1xf32>
    %65 = math.log %64 : vector<32x1xf32>
    %66 = vector.broadcast %65 : vector<32x1xf32> to vector<32x32xf32>
    %67 = arith.subf %61, %66 : vector<32x32xf32>
    %c0_28 = arith.constant 0 : index
    %c0_29 = arith.constant 0 : index
    %68 = vector.load %arg5[%c0_28, %c0_29] : memref<32x32xf32, #tpu.memory_space<vmem>>, vector<32x32xf32>
    tpu.vector_store %arg5[%c0_28, %c0_29], %67 {strides = array<i32>} : memref<32x32xf32, #tpu.memory_space<vmem>>, vector<32x32xf32>,
    %69 = vector.shape_cast %54 : vector<32x32xf32> to vector<4x8x32xf32>
    %cst_30 = arith.constant dense<0.000000e+00> : vector<4x32xf32>
    %70 = vector.multi_reduction <add>, %69, %cst_30 [1] : vector<4x8x32xf32> to vector<4x32xf32>
    %71 = vector.extract_strided_slice %70 {offsets = [0, 0], sizes = [2, 32], strides = [1, 1]} : vector<4x32xf32> to vector<2x32xf32>
    %72 = vector.extract_strided_slice %70 {offsets = [2, 0], sizes = [2, 32], strides = [1, 1]} : vector<4x32xf32> to vector<2x32xf32>
    %73 = tpu.concatenate %71, %72 in 1 : vector<2x32xf32>, vector<2x32xf32> -> vector<2x64xf32>
    %cst_31 = arith.constant dense<0.000000e+00> : vector<2x2xf32>
    %74 = tpu.matmul %73, %3, %cst_31 {dimension_numbers = #tpu.dot_dimension_numbers<[1], [0], [0], [1], [0, 0, 1, 1], [], []>} : vector<2x64xf32>, vector<64x2xf32>, vector<2x2xf32> -> vector<2x2xf32>
    %75 = vector.broadcast %5 : vector<1x2xf32> to vector<2x2xf32>
    %76 = arith.addf %74, %75 : vector<2x2xf32>
    %cst_32 = arith.constant dense<0xFF800000> : vector<2xf32>
    %77 = vector.multi_reduction <maximumf>, %76, %cst_32 [1] : vector<2x2xf32> to vector<2xf32>
    %78 = vector.shape_cast %77 : vector<2xf32> to vector<2x1xf32>
    %79 = vector.broadcast %78 : vector<2x1xf32> to vector<2x2xf32>
    %80 = arith.subf %76, %79 : vector<2x2xf32>
    %81 = math.exp %80 : vector<2x2xf32>
    %cst_33 = arith.constant dense<0.000000e+00> : vector<2xf32>
    %82 = vector.multi_reduction <add>, %81, %cst_33 [1] : vector<2x2xf32> to vector<2xf32>
    %83 = vector.shape_cast %82 : vector<2xf32> to vector<2x1xf32>
    %84 = math.log %83 : vector<2x1xf32>
    %85 = vector.broadcast %84 : vector<2x1xf32> to vector<2x2xf32>
    %86 = arith.subf %80, %85 : vector<2x2xf32>
    %c0_34 = arith.constant 0 : index
    %c0_35 = arith.constant 0 : index
    %87 = vector.load %arg6[%c0_34, %c0_35] : memref<2x2xf32, #tpu.memory_space<vmem>>, vector<2x2xf32>
    tpu.vector_store %arg6[%c0_34, %c0_35], %86 {strides = array<i32>} : memref<2x2xf32, #tpu.memory_space<vmem>>, vector<2x2xf32>,
    return
  }
}

</mosaic_0001>

<llo_original>
// kernel: molgraph2_forward.1
$region0: #{molgraph2_forward.1}
  #allocation0 [shape = 'u32[]', space=smem, size = 0x4, offset = 0x4, fixed_abs, tag = 'smem constant byte address 0x4 - core index']
  #allocation1 [shape = 'u32[144,128]{1,0:T(1,128)}', space=vmem, size = 0x12000, scoped, tag = 'internal scratch']
  %s0 = inlined_call_operand.vmem [shape: f32[32,32], index: 0, kind: input, shape index: {}]
  %s1 = inlined_call_operand.vmem [shape: f32[32,32], index: 1, kind: input, shape index: {}]
  %s2 = inlined_call_operand.vmem [shape: f32[64,32], index: 2, kind: input, shape index: {}]
  %s3 = inlined_call_operand.vmem [shape: f32[96,2], index: 3, kind: input, shape index: {}]
  %s4 = inlined_call_operand.vmem [shape: f32[2,32], index: 4, kind: input, shape index: {}]
  %s5 = inlined_call_operand.vmem [shape: f32[32,32], index: 5, kind: output, shape index: {0}]
  %s6 = inlined_call_operand.hbm [shape: f32[2,2], index: 6, kind: output, shape index: {1}]
  %7 = xla_tuple %s5, %s6
  %s8 = sld [smem:[#allocation0]]
  $region38: #{molgraph2_forward.1} parent=0
    _
  %s10 = ssub.s32 1, %s8
  %s11 = scalar_select 0, %s10, %s8
  $region1: #{molgraph2_forward.1} parent=0
    #allocation2 [shape = 'u8[1024]{0}', space=vmem, size = 0x400, scoped, tag = 'output window, operand 1, single buffered']
    #allocation3 [shape = 's32[1]{0}', space=sflag, size = 0x4, scoped, tag = 'scoped memory for molgraph2_forward.1']
    %12 = vsyncpa [#allocation3], 0
    // Predicated region
    $region2: #{molgraph2_forward.1} parent=1 // pred_check
      _
    $region3: #{molgraph2_forward.1} parent=1 // pred_check_branch
      %14 = sbr.rel (0) target = $region5
    $region4: #{molgraph2_forward.1} parent=1 // pred_region
      _
    $region5: #{molgraph2_forward.1} parent=1 // pred_fallthru
      _
    // Predicated region
    $region6: #{molgraph2_forward.1} parent=1 // pred_check
      _
    $region7: #{molgraph2_forward.1} parent=1 // pred_check_branch
      %16 = sbr.rel (0) target = $region9
    $region8: #{molgraph2_forward.1} parent=1 // pred_region
      _
    $region9: #{molgraph2_forward.1} parent=1 // pred_fallthru
      _
    // Predicated region
    $region10: #{molgraph2_forward.1} parent=1 // pred_check
      _
    $region11: #{molgraph2_forward.1} parent=1 // pred_check_branch
      %18 = sbr.rel (0) target = $region13
    $region12: #{molgraph2_forward.1} parent=1 // pred_region
      _
    $region13: #{molgraph2_forward.1} parent=1 // pred_fallthru
      _
    // Predicated region
    $region14: #{molgraph2_forward.1} parent=1 // pred_check
      _
    $region15: #{molgraph2_forward.1} parent=1 // pred_check_branch
      %20 = sbr.rel (0) target = $region17
    $region16: #{molgraph2_forward.1} parent=1 // pred_region
      _
    $region17: #{molgraph2_forward.1} parent=1 // pred_fallthru
      _
    // Predicated region
    $region18: #{molgraph2_forward.1} parent=1 // pred_check
      _
    $region19: #{molgraph2_forward.1} parent=1 // pred_check_branch
      %22 = sbr.rel (0) target = $region21
    $region20: #{molgraph2_forward.1} parent=1 // pred_region
      _
    $region21: #{molgraph2_forward.1} parent=1 // pred_fallthru
      _
    %v23 = vld [vmem:[%s2] sm:$0xff]
    %v24 = vld [vmem:[%s2 + $0x8] sm:$0xff]
    %v25 = vld [vmem:[%s2 + $0x10] sm:$0xff]
    %v26 = vld [vmem:[%s2 + $0x18] sm:$0xff]
    %v27 = vld [vmem:[%s2 + $0x20] sm:$0xff]
    %v28 = vld [vmem:[%s2 + $0x28] sm:$0xff]
    %v29 = vld [vmem:[%s2 + $0x30] sm:$0xff]
    %v30 = vld [vmem:[%s2 + $0x38] sm:$0xff]
    %v31 = vld [vmem:[%s3] sm:$0xff]
    %v32 = vld [vmem:[%s3 + $0x8] sm:$0xff]
    %v33 = vld [vmem:[%s3 + $0x10] sm:$0xff]
    %v34 = vld [vmem:[%s3 + $0x18] sm:$0xff]
    %v35 = vld [vmem:[%s3 + $0x20] sm:$0xff]
    %v36 = vld [vmem:[%s3 + $0x28] sm:$0xff]
    %v37 = vld [vmem:[%s3 + $0x30] sm:$0xff]
    %v38 = vld [vmem:[%s3 + $0x38] sm:$0xff]
    %v39 = vld [vmem:[%s3 + $0x40] sm:$0xff]
    %v40 = vld [vmem:[%s3 + $0x48] sm:$0xff]
    %v41 = vld [vmem:[%s3 + $0x50] sm:$0xff]
    %v42 = vld [vmem:[%s3 + $0x58] sm:$0xff]
    %v43 = vld [vmem:[%s4] sm:$0x1]
    %v44 = vld [vmem:[%s4 + $0x1] sm:$0x1]
    %v45 = vld [vmem:[%s0] sm:$0xff]
    %v46 = vld [vmem:[%s0 + $0x8] sm:$0xff]
    %v47 = vld [vmem:[%s0 + $0x10] sm:$0xff]
    %v48 = vld [vmem:[%s0 + $0x18] sm:$0xff]
    %vm49 = vcmask 261120
    %v51 = vsel %vm49, %v45, 0
    %v54 = vsel %vm49, %v46, 0
    %v57 = vsel %vm49, %v47, 0
    %v60 = vsel %vm49, %v48, 0
    %62 = vmatprep.subr.mxu0 0.0
    %63 = vmatpush1.msra.mxu0 %v23
    %64 = vmatprep.subr.mxu0 0.0
    %65 = vmatpush1.msra.mxu0 %v24
    %66 = vmatprep.subr.mxu0 0.0
    %67 = vmatpush1.msra.mxu0 %v25
    %68 = vmatprep.subr.mxu0 0.0
    %69 = vmatpush1.msra.mxu0 %v26
    %70 = vmatprep.subr.mxu0 0.0
    %71 = vmatpush1.msra.mxu0 0.0
    %72 = vmatprep.subr.mxu0 0.0
    %73 = vmatpush1.msra.mxu0 0.0
    %74 = vmatprep.subr.mxu0 0.0
    %75 = vmatpush1.msra.mxu0 0.0
    %76 = vmatprep.subr.mxu0 0.0
    %77 = vmatpush1.msra.mxu0 0.0
    %78 = vmatprep.subr.mxu0 0.0
    %79 = vmatpush1.msra.mxu0 0.0
    %80 = vmatprep.subr.mxu0 0.0
    %81 = vmatpush1.msra.mxu0 0.0
    %82 = vmatprep.subr.mxu0 0.0
    %83 = vmatpush1.msra.mxu0 0.0
    %84 = vmatprep.subr.mxu0 0.0
    %85 = vmatpush1.msra.mxu0 0.0
    %86 = vmatprep.subr.mxu0 0.0
    %87 = vmatpush1.msra.mxu0 0.0
    %88 = vmatprep.subr.mxu0 0.0
    %89 = vmatpush1.msra.mxu0 0.0
    %90 = vmatprep.subr.mxu0 0.0
    %91 = vmatpush1.msra.mxu0 0.0
    %92 = vmatprep.subr.mxu0 0.0
    %93 = vmatpush1.msra.mxu0 0.0
    %94 = vmatprep.subr.mxu0 0.0
    %95 = vmatpush1.msra.mxu0 0.0
    %96 = vmatprep.subr.mxu0 0.0
    %97 = vmatpush1.msra.mxu0 0.0
    %98 = vmatprep.subr.mxu0 0.0
    %99 = vmatpush1.msra.mxu0 0.0
    %100 = vmatprep.subr.mxu0 0.0
    %101 = vmatpush1.msra.mxu0 0.0
    %102 = vmatprep.subr.mxu0 0.0
    %103 = vmatpush1.msra.mxu0 0.0
    %104 = vmatprep.subr.mxu0 0.0
    %105 = vmatpush1.msra.mxu0 0.0
    %106 = vmatprep.subr.mxu0 0.0
    %107 = vmatpush1.msra.mxu0 0.0
    %108 = vmatprep.subr.mxu0 0.0
    %109 = vmatpush1.msra.mxu0 0.0
    %110 = vmatprep.subr.mxu0 0.0
    %111 = vmatpush1.msra.mxu0 0.0
    %112 = vmatprep.subr.mxu0 0.0
    %113 = vmatpush1.msra.mxu0 0.0
    %114 = vmatprep.subr.mxu0 0.0
    %115 = vmatpush1.msra.mxu0 0.0
    %116 = vmatprep.subr.mxu0 0.0
    %117 = vmatpush1.msra.mxu0 0.0
    %118 = vmatprep.subr.mxu0 0.0
    %119 = vmatpush1.msra.mxu0 0.0
    %120 = vmatprep.subr.mxu0 0.0
    %121 = vmatpush1.msra.mxu0 0.0
    %122 = vmatprep.subr.mxu0 0.0
    %123 = vmatpush1.msra.mxu0 0.0
    %124 = vmatprep.subr.mxu0 0.0
    %125 = vmatpush1.msra.mxu0 0.0
    %126 = vmatprep.mubr.f32.mxu0 0.0
    %127 = vmatmul.mubr.f32.gmra.mrb[0].mxu0 %v51
    %v128 = vpop.f32.mrb[0].mxu0
    %v129 = vadd.f32 0.0, %v128
    %v130 = vpop.f32.mrb[0].mxu0
    %131 = vmatprep.mubr.f32.mxu0 0.0
    %132 = vmatmul.mubr.f32.gmra.mrb[0].mxu0 %v54
    %v133 = vpop.f32.mrb[0].mxu0
    %v134 = vadd.f32 0.0, %v133
    %v135 = vpop.f32.mrb[0].mxu0
    %136 = vmatprep.mubr.f32.mxu0 0.0
    %137 = vmatmul.mubr.f32.gmra.mrb[0].mxu0 %v57
    %v138 = vpop.f32.mrb[0].mxu0
    %v139 = vadd.f32 0.0, %v138
    %v140 = vpop.f32.mrb[0].mxu0
    %141 = vmatprep.mubr.f32.mxu0 0.0
    %142 = vmatmul.mubr.f32.gmra.mrb[0].mxu0 %v60
    %v143 = vpop.f32.mrb[0].mxu0
    %v144 = vadd.f32 0.0, %v143
    %v145 = vpop.f32.mrb[0].mxu0
    %146 = vdwg.mxu0
    %v148 = vsel %vm49, %v129, 0
    %v151 = vsel %vm49, %v134, 0
    %v154 = vsel %vm49, %v139, 0
    %v157 = vsel %vm49, %v144, 0
    %159 = vmatprep.subr.mxu0 0.0
    %160 = vmatpush1.msra.mxu0 %v31
    %161 = vmatprep.subr.mxu0 0.0
    %162 = vmatpush1.msra.mxu0 %v32
    %163 = vmatprep.subr.mxu0 0.0
    %164 = vmatpush1.msra.mxu0 %v33
    %165 = vmatprep.subr.mxu0 0.0
    %166 = vmatpush1.msra.mxu0 %v34
    %167 = vmatprep.subr.mxu0 0.0
    %168 = vmatpush1.msra.mxu0 0.0
    %169 = vmatprep.subr.mxu0 0.0
    %170 = vmatpush1.msra.mxu0 0.0
    %171 = vmatprep.subr.mxu0 0.0
    %172 = vmatpush1.msra.mxu0 0.0
    %173 = vmatprep.subr.mxu0 0.0
    %174 = vmatpush1.msra.mxu0 0.0
    %175 = vmatprep.subr.mxu0 0.0
    %176 = vmatpush1.msra.mxu0 0.0
    %177 = vmatprep.subr.mxu0 0.0
    %178 = vmatpush1.msra.mxu0 0.0
    %179 = vmatprep.subr.mxu0 0.0
    %180 = vmatpush1.msra.mxu0 0.0
    %181 = vmatprep.subr.mxu0 0.0
    %182 = vmatpush1.msra.mxu0 0.0
    %183 = vmatprep.subr.mxu0 0.0
    %184 = vmatpush1.msra.mxu0 0.0
    %185 = vmatprep.subr.mxu0 0.0
    %186 = vmatpush1.msra.mxu0 0.0
    %187 = vmatprep.subr.mxu0 0.0
    %188 = vmatpush1.msra.mxu0 0.0
    %189 = vmatprep.subr.mxu0 0.0
    %190 = vmatpush1.msra.mxu0 0.0
    %191 = vmatprep.subr.mxu0 0.0
    %192 = vmatpush1.msra.mxu0 0.0
    %193 = vmatprep.subr.mxu0 0.0
    %194 = vmatpush1.msra.mxu0 0.0
    %195 = vmatprep.subr.mxu0 0.0
    %196 = vmatpush1.msra.mxu0 0.0
    %197 = vmatprep.subr.mxu0 0.0
    %198 = vmatpush1.msra.mxu0 0.0
    %199 = vmatprep.subr.mxu0 0.0
    %200 = vmatpush1.msra.mxu0 0.0
    %201 = vmatprep.subr.mxu0 0.0
    %202 = vmatpush1.msra.mxu0 0.0
    %203 = vmatprep.subr.mxu0 0.0
    %204 = vmatpush1.msra.mxu0 0.0
    %205 = vmatprep.subr.mxu0 0.0
    %206 = vmatpush1.msra.mxu0 0.0
    %207 = vmatprep.subr.mxu0 0.0
    %208 = vmatpush1.msra.mxu0 0.0
    %209 = vmatprep.subr.mxu0 0.0
    %210 = vmatpush1.msra.mxu0 0.0
    %211 = vmatprep.subr.mxu0 0.0
    %212 = vmatpush1.msra.mxu0 0.0
    %213 = vmatprep.subr.mxu0 0.0
    %214 = vmatpush1.msra.mxu0 0.0
    %215 = vmatprep.subr.mxu0 0.0
    %216 = vmatpush1.msra.mxu0 0.0
    %217 = vmatprep.subr.mxu0 0.0
    %218 = vmatpush1.msra.mxu0 0.0
    %219 = vmatprep.subr.mxu0 0.0
    %220 = vmatpush1.msra.mxu0 0.0
    %221 = vmatprep.subr.mxu0 0.0
    %222 = vmatpush1.msra.mxu0 0.0
    %223 = vmatprep.mubr.f32.mxu0 0.0
    %224 = vmatmul.mubr.f32.gmra.mrb[0].mxu0 %v148
    %v225 = vpop.f32.mrb[0].mxu0
    %v226 = vadd.f32 0.0, %v225
    %v227 = vpop.f32.mrb[0].mxu0
    %228 = vmatprep.mubr.f32.mxu0 0.0
    %229 = vmatmul.mubr.f32.gmra.mrb[0].mxu0 %v151
    %v230 = vpop.f32.mrb[0].mxu0
    %v231 = vadd.f32 0.0, %v230
    %v232 = vpop.f32.mrb[0].mxu0
    %233 = vmatprep.mubr.f32.mxu0 0.0
    %234 = vmatmul.mubr.f32.gmra.mrb[0].mxu0 %v154
    %v235 = vpop.f32.mrb[0].mxu0
    %v236 = vadd.f32 0.0, %v235
    %v237 = vpop.f32.mrb[0].mxu0
    %238 = vmatprep.mubr.f32.mxu0 0.0
    %239 = vmatmul.mubr.f32.gmra.mrb[0].mxu0 %v157
    %v240 = vpop.f32.mrb[0].mxu0
    %v241 = vadd.f32 0.0, %v240
    %v242 = vpop.f32.mrb[0].mxu0
    %243 = vdwg.mxu0
    %v244 = vlaneseq
    %v245 = vand.u32 %v244, 127
    %vm246 = vcmp.eq.s32.totalorder %v245, 0
    %v247 = vsel %vm246, 1, 0
    %v248 = vcvt.s32.f32 %v247
    %vm249 = vcmp.eq.s32.totalorder %v245, 1
    %v250 = vsel %vm249, 1, 0
    %v251 = vcvt.s32.f32 %v250
    %v252 = vmul.f32 %v226, %v248
    %v253 = vmul.f32 %v231, %v248
    %v254 = vmul.f32 %v236, %v248
    %v255 = vmul.f32 %v241, %v248
    %v256 = vadd.f32 %v252, %v251
    %v257 = vadd.f32 %v253, %v251
    %v258 = vadd.f32 %v254, %v251
    %v259 = vadd.f32 %v255, %v251
    %v260 = vmul.f32 %v226, %v251
    %v261 = vmul.f32 %v231, %v251
    %v262 = vmul.f32 %v236, %v251
    %v263 = vmul.f32 %v241, %v251
    %v264 = vadd.f32 %v260, %v248
    %v265 = vadd.f32 %v261, %v248
    %v266 = vadd.f32 %v262, %v248
    %v267 = vadd.f32 %v263, %v248
    %vm268 = vcmask 15360
    %v270 = vsel %vm268, %v256, 0
    %v273 = vsel %vm268, %v257, 0
    %v276 = vsel %vm268, %v258, 0
    %v279 = vsel %vm268, %v259, 0
    %v282 = vsel %vm268, %v264, 0
    %v285 = vsel %vm268, %v265, 0
    %v288 = vsel %vm268, %v266, 0
    %v291 = vsel %vm268, %v267, 0
    %293 = vmatprep.subr.mxu0 0.0
    %294 = vmatpush1.xpose.msra.mxu0 %v282
    %295 = vmatprep.subr.mxu0 0.0
    %296 = vmatpush1.xpose.msra.mxu0 %v285
    %297 = vmatprep.subr.mxu0 0.0
    %298 = vmatpush1.xpose.msra.mxu0 %v288
    %299 = vmatprep.subr.mxu0 0.0
    %300 = vmatpush1.xpose.msra.mxu0 %v291
    %301 = vmatprep.subr.mxu0 0.0
    %302 = vmatpush1.xpose.msra.mxu0 0.0
    %303 = vmatprep.subr.mxu0 0.0
    %304 = vmatpush1.xpose.msra.mxu0 0.0
    %305 = vmatprep.subr.mxu0 0.0
    %306 = vmatpush1.xpose.msra.mxu0 0.0
    %307 = vmatprep.subr.mxu0 0.0
    %308 = vmatpush1.xpose.msra.mxu0 0.0
    %309 = vmatprep.subr.mxu0 0.0
    %310 = vmatpush1.xpose.msra.mxu0 0.0
    %311 = vmatprep.subr.mxu0 0.0
    %312 = vmatpush1.xpose.msra.mxu0 0.0
    %313 = vmatprep.subr.mxu0 0.0
    %314 = vmatpush1.xpose.msra.mxu0 0.0
    %315 = vmatprep.subr.mxu0 0.0
    %316 = vmatpush1.xpose.msra.mxu0 0.0
    %317 = vmatprep.subr.mxu0 0.0
    %318 = vmatpush1.xpose.msra.mxu0 0.0
    %319 = vmatprep.subr.mxu0 0.0
    %320 = vmatpush1.xpose.msra.mxu0 0.0
    %321 = vmatprep.subr.mxu0 0.0
    %322 = vmatpush1.xpose.msra.mxu0 0.0
    %323 = vmatprep.subr.mxu0 0.0
    %324 = vmatpush1.xpose.msra.mxu0 0.0
    %325 = vmatprep.subr.mxu0 0.0
    %326 = vmatpush1.xpose.msra.mxu0 0.0
    %327 = vmatprep.subr.mxu0 0.0
    %328 = vmatpush1.xpose.msra.mxu0 0.0
    %329 = vmatprep.subr.mxu0 0.0
    %330 = vmatpush1.xpose.msra.mxu0 0.0
    %331 = vmatprep.subr.mxu0 0.0
    %332 = vmatpush1.xpose.msra.mxu0 0.0
    %333 = vmatprep.subr.mxu0 0.0
    %334 = vmatpush1.xpose.msra.mxu0 0.0
    %335 = vmatprep.subr.mxu0 0.0
    %336 = vmatpush1.xpose.msra.mxu0 0.0
    %337 = vmatprep.subr.mxu0 0.0
    %338 = vmatpush1.xpose.msra.mxu0 0.0
    %339 = vmatprep.subr.mxu0 0.0
    %340 = vmatpush1.xpose.msra.mxu0 0.0
    %341 = vmatprep.subr.mxu0 0.0
    %342 = vmatpush1.xpose.msra.mxu0 0.0
    %343 = vmatprep.subr.mxu0 0.0
    %344 = vmatpush1.xpose.msra.mxu0 0.0
    %345 = vmatprep.subr.mxu0 0.0
    %346 = vmatpush1.xpose.msra.mxu0 0.0
    %347 = vmatprep.subr.mxu0 0.0
    %348 = vmatpush1.xpose.msra.mxu0 0.0
    %349 = vmatprep.subr.mxu0 0.0
    %350 = vmatpush1.xpose.msra.mxu0 0.0
    %351 = vmatprep.subr.mxu0 0.0
    %352 = vmatpush1.xpose.msra.mxu0 0.0
    %353 = vmatprep.subr.mxu0 0.0
    %354 = vmatpush1.xpose.msra.mxu0 0.0
    %355 = vmatprep.subr.mxu0 0.0
    %356 = vmatpush1.xpose.msra.mxu0 0.0
    %357 = vmatprep.mubr.f32.mxu0 0.0
    %358 = vmatmul.mubr.f32.gmra.mrb[0].mxu0 %v270
    %v359 = vpop.f32.mrb[0].mxu0
    %v360 = vadd.f32 0.0, %v359
    %v361 = vpop.f32.mrb[0].mxu0
    %362 = vmatprep.mubr.f32.mxu0 0.0
    %363 = vmatmul.mubr.f32.gmra.mrb[0].mxu0 %v273
    %v364 = vpop.f32.mrb[0].mxu0
    %v365 = vadd.f32 0.0, %v364
    %v366 = vpop.f32.mrb[0].mxu0
    %367 = vmatprep.mubr.f32.mxu0 0.0
    %368 = vmatmul.mubr.f32.gmra.mrb[0].mxu0 %v276
    %v369 = vpop.f32.mrb[0].mxu0
    %v370 = vadd.f32 0.0, %v369
    %v371 = vpop.f32.mrb[0].mxu0
    %372 = vmatprep.mubr.f32.mxu0 0.0
    %373 = vmatmul.mubr.f32.gmra.mrb[0].mxu0 %v279
    %v374 = vpop.f32.mrb[0].mxu0
    %v375 = vadd.f32 0.0, %v374
    %v376 = vpop.f32.mrb[0].mxu0
    %377 = vdwg.mxu0
    %vm378 = vcmp.gt.f32.partialorder %v360, 0.0
    %vm379 = vcmp.gt.f32.partialorder %v365, 0.0
    %vm380 = vcmp.gt.f32.partialorder %v370, 0.0
    %vm381 = vcmp.gt.f32.partialorder %v375, 0.0
    %v382 = vmul.f32 %v360, 0.2
    %v383 = vmul.f32 %v365, 0.2
    %v384 = vmul.f32 %v370, 0.2
    %v385 = vmul.f32 %v375, 0.2
    %v386 = vsel %vm378, %v360, %v382
    %v387 = vsel %vm379, %v365, %v383
    %v388 = vsel %vm380, %v370, %v384
    %v389 = vsel %vm381, %v375, %v385
    %v390 = vld [vmem:[%s1] sm:$0xff]
    %v391 = vld [vmem:[%s1 + $0x8] sm:$0xff]
    %v392 = vld [vmem:[%s1 + $0x10] sm:$0xff]
    %v393 = vld [vmem:[%s1 + $0x18] sm:$0xff]
    %vm394 = vcmp.gt.f32.partialorder %v390, 0.0
    %vm395 = vcmp.gt.f32.partialorder %v391, 0.0
    %vm396 = vcmp.gt.f32.partialorder %v392, 0.0
    %vm397 = vcmp.gt.f32.partialorder %v393, 0.0
    %v398 = vsel %vm394, %v386, -1e+09
    %v399 = vsel %vm395, %v387, -1e+09
    %v400 = vsel %vm396, %v388, -1e+09
    %v401 = vsel %vm397, %v389, -1e+09
    %v402 = vsel %vm49, %v398, -inf
    %403 = vmax.xlane.f32.xlu0 %v402
    %v404 = vpop.xlane.xlu0 %403
    %v405 = vsel %vm49, %v399, -inf
    %406 = vmax.xlane.f32.xlu0 %v405
    %v407 = vpop.xlane.xlu0 %406
    %v408 = vsel %vm49, %v400, -inf
    %409 = vmax.xlane.f32.xlu0 %v408
    %v410 = vpop.xlane.xlu0 %409
    %v411 = vsel %vm49, %v401, -inf
    %412 = vmax.xlane.f32.xlu0 %v411
    %v413 = vpop.xlane.xlu0 %412
    %v414 = vsub.f32 %v398, %v404
    %v415 = vsub.f32 %v399, %v407
    %v416 = vsub.f32 %v400, %v410
    %v417 = vsub.f32 %v401, %v413
    %v418 = vmul.f32 %v414, 1.442695
    %v419 = vpow.pop %v418
    %v420 = vmul.f32 %v415, 1.442695
    %v421 = vpow.pop %v420
    %v422 = vmul.f32 %v416, 1.442695
    %v423 = vpow.pop %v422
    %v424 = vmul.f32 %v417, 1.442695
    %v425 = vpow.pop %v424
    %v426 = vsel %vm49, %v419, 0.0
    %427 = vadd.xlane.f32.xlu0 %v426
    %v428 = vpop.xlane.xlu0 %427
    %v429 = vsel %vm49, %v421, 0.0
    %430 = vadd.xlane.f32.xlu0 %v429
    %v431 = vpop.xlane.xlu0 %430
    %v432 = vsel %vm49, %v423, 0.0
    %433 = vadd.xlane.f32.xlu0 %v432
    %v434 = vpop.xlane.xlu0 %433
    %v435 = vsel %vm49, %v425, 0.0
    %436 = vadd.xlane.f32.xlu0 %v435
    %v437 = vpop.xlane.xlu0 %436
    %v438 = vrcp.pop %v428
    %v439 = vmul.f32 %v419, %v438
    %v440 = vrcp.pop %v431
    %v441 = vmul.f32 %v421, %v440
    %v442 = vrcp.pop %v434
    %v443 = vmul.f32 %v423, %v442
    %v444 = vrcp.pop %v437
    %v445 = vmul.f32 %v425, %v444
    %v447 = vsel %vm49, %v439, 0
    %v450 = vsel %vm49, %v441, 0
    %v453 = vsel %vm49, %v443, 0
    %v456 = vsel %vm49, %v445, 0
    %458 = vmatprep.subr.mxu0 0.0
    %459 = vmatpush1.msra.mxu0 %v129
    %460 = vmatprep.subr.mxu0 0.0
    %461 = vmatpush1.msra.mxu0 %v134
    %462 = vmatprep.subr.mxu0 0.0
    %463 = vmatpush1.msra.mxu0 %v139
    %464 = vmatprep.subr.mxu0 0.0
    %465 = vmatpush1.msra.mxu0 %v144
    %466 = vmatprep.subr.mxu0 0.0
    %467 = vmatpush1.msra.mxu0 0.0
    %468 = vmatprep.subr.mxu0 0.0
    %469 = vmatpush1.msra.mxu0 0.0
    %470 = vmatprep.subr.mxu0 0.0
    %471 = vmatpush1.msra.mxu0 0.0
    %472 = vmatprep.subr.mxu0 0.0
    %473 = vmatpush1.msra.mxu0 0.0
    %474 = vmatprep.subr.mxu0 0.0
    %475 = vmatpush1.msra.mxu0 0.0
    %476 = vmatprep.subr.mxu0 0.0
    %477 = vmatpush1.msra.mxu0 0.0
    %478 = vmatprep.subr.mxu0 0.0
    %479 = vmatpush1.msra.mxu0 0.0
    %480 = vmatprep.subr.mxu0 0.0
    %481 = vmatpush1.msra.mxu0 0.0
    %482 = vmatprep.subr.mxu0 0.0
    %483 = vmatpush1.msra.mxu0 0.0
    %484 = vmatprep.subr.mxu0 0.0
    %485 = vmatpush1.msra.mxu0 0.0
    %486 = vmatprep.subr.mxu0 0.0
    %487 = vmatpush1.msra.mxu0 0.0
    %488 = vmatprep.subr.mxu0 0.0
    %489 = vmatpush1.msra.mxu0 0.0
    %490 = vmatprep.subr.mxu0 0.0
    %491 = vmatpush1.msra.mxu0 0.0
    %492 = vmatprep.subr.mxu0 0.0
    %493 = vmatpush1.msra.mxu0 0.0
    %494 = vmatprep.subr.mxu0 0.0
    %495 = vmatpush1.msra.mxu0 0.0
    %496 = vmatprep.subr.mxu0 0.0
    %497 = vmatpush1.msra.mxu0 0.0
    %498 = vmatprep.subr.mxu0 0.0
    %499 = vmatpush1.msra.mxu0 0.0
    %500 = vmatprep.subr.mxu0 0.0
    %501 = vmatpush1.msra.mxu0 0.0
    %502 = vmatprep.subr.mxu0 0.0
    %503 = vmatpush1.msra.mxu0 0.0
    %504 = vmatprep.subr.mxu0 0.0
    %505 = vmatpush1.msra.mxu0 0.0
    %506 = vmatprep.subr.mxu0 0.0
    %507 = vmatpush1.msra.mxu0 0.0
    %508 = vmatprep.subr.mxu0 0.0
    %509 = vmatpush1.msra.mxu0 0.0
    %510 = vmatprep.subr.mxu0 0.0
    %511 = vmatpush1.msra.mxu0 0.0
    %512 = vmatprep.subr.mxu0 0.0
    %513 = vmatpush1.msra.mxu0 0.0
    %514 = vmatprep.subr.mxu0 0.0
    %515 = vmatpush1.msra.mxu0 0.0
    %516 = vmatprep.subr.mxu0 0.0
    %517 = vmatpush1.msra.mxu0 0.0
    %518 = vmatprep.subr.mxu0 0.0
    %519 = vmatpush1.msra.mxu0 0.0
    %520 = vmatprep.subr.mxu0 0.0
    %521 = vmatpush1.msra.mxu0 0.0
    %522 = vmatprep.mubr.f32.mxu0 0.0
    %523 = vmatmul.mubr.f32.gmra.mrb[0].mxu0 %v447
    %v524 = vpop.f32.mrb[0].mxu0
    %v525 = vadd.f32 0.0, %v524
    %v526 = vpop.f32.mrb[0].mxu0
    %527 = vmatprep.mubr.f32.mxu0 0.0
    %528 = vmatmul.mubr.f32.gmra.mrb[0].mxu0 %v450
    %v529 = vpop.f32.mrb[0].mxu0
    %v530 = vadd.f32 0.0, %v529
    %v531 = vpop.f32.mrb[0].mxu0
    %532 = vmatprep.mubr.f32.mxu0 0.0
    %533 = vmatmul.mubr.f32.gmra.mrb[0].mxu0 %v453
    %v534 = vpop.f32.mrb[0].mxu0
    %v535 = vadd.f32 0.0, %v534
    %v536 = vpop.f32.mrb[0].mxu0
    %537 = vmatprep.mubr.f32.mxu0 0.0
    %538 = vmatmul.mubr.f32.gmra.mrb[0].mxu0 %v456
    %v539 = vpop.f32.mrb[0].mxu0
    %v540 = vadd.f32 0.0, %v539
    %v541 = vpop.f32.mrb[0].mxu0
    %542 = vdwg.mxu0
    %vm543 = vcmp.gt.f32.partialorder %v525, 0.0
    %vm544 = vcmp.gt.f32.partialorder %v530, 0.0
    %vm545 = vcmp.gt.f32.partialorder %v535, 0.0
    %vm546 = vcmp.gt.f32.partialorder %v540, 0.0
    %v547 = vmin.f32 %v525, 0.0
    %v548 = vmin.f32 %v530, 0.0
    %v549 = vmin.f32 %v535, 0.0
    %v550 = vmin.f32 %v540, 0.0
    %v551 = vmul.f32 %v547, 1.442695
    %v552 = vpow.pop %v551
    %v553 = vmul.f32 %v548, 1.442695
    %v554 = vpow.pop %v553
    %v555 = vmul.f32 %v549, 1.442695
    %v556 = vpow.pop %v555
    %v557 = vmul.f32 %v550, 1.442695
    %v558 = vpow.pop %v557
    %v559 = vsub.f32 %v552, 1.0
    %v560 = vsub.f32 %v554, 1.0
    %v561 = vsub.f32 %v556, 1.0
    %v562 = vsub.f32 %v558, 1.0
    %v563 = vsel %vm543, %v525, %v559
    %v564 = vsel %vm544, %v530, %v560
    %v565 = vsel %vm545, %v535, %v561
    %v566 = vsel %vm546, %v540, %v562
    %v567 = vlaneseq
    %v568 = vshrl.u32 %v567, 7
    %v569 = vsub.s32 0, %v568
    %v570 = vrot.slane %v43, %v569
    %v572 = vsel %vm49, %v563, 0
    %v575 = vsel %vm49, %v564, 0
    %v578 = vsel %vm49, %v565, 0
    %v581 = vsel %vm49, %v566, 0
    %583 = vmatprep.subr.mxu0 0.0
    %584 = vmatpush1.msra.mxu0 %v27
    %585 = vmatprep.subr.mxu0 0.0
    %586 = vmatpush1.msra.mxu0 %v28
    %587 = vmatprep.subr.mxu0 0.0
    %588 = vmatpush1.msra.mxu0 %v29
    %589 = vmatprep.subr.mxu0 0.0
    %590 = vmatpush1.msra.mxu0 %v30
    %591 = vmatprep.subr.mxu0 0.0
    %592 = vmatpush1.msra.mxu0 0.0
    %593 = vmatprep.subr.mxu0 0.0
    %594 = vmatpush1.msra.mxu0 0.0
    %595 = vmatprep.subr.mxu0 0.0
    %596 = vmatpush1.msra.mxu0 0.0
    %597 = vmatprep.subr.mxu0 0.0
    %598 = vmatpush1.msra.mxu0 0.0
    %599 = vmatprep.subr.mxu0 0.0
    %600 = vmatpush1.msra.mxu0 0.0
    %601 = vmatprep.subr.mxu0 0.0
    %602 = vmatpush1.msra.mxu0 0.0
    %603 = vmatprep.subr.mxu0 0.0
    %604 = vmatpush1.msra.mxu0 0.0
    %605 = vmatprep.subr.mxu0 0.0
    %606 = vmatpush1.msra.mxu0 0.0
    %607 = vmatprep.subr.mxu0 0.0
    %608 = vmatpush1.msra.mxu0 0.0
    %609 = vmatprep.subr.mxu0 0.0
    %610 = vmatpush1.msra.mxu0 0.0
    %611 = vmatprep.subr.mxu0 0.0
    %612 = vmatpush1.msra.mxu0 0.0
    %613 = vmatprep.subr.mxu0 0.0
    %614 = vmatpush1.msra.mxu0 0.0
    %615 = vmatprep.subr.mxu0 0.0
    %616 = vmatpush1.msra.mxu0 0.0
    %617 = vmatprep.subr.mxu0 0.0
    %618 = vmatpush1.msra.mxu0 0.0
    %619 = vmatprep.subr.mxu0 0.0
    %620 = vmatpush1.msra.mxu0 0.0
    %621 = vmatprep.subr.mxu0 0.0
    %622 = vmatpush1.msra.mxu0 0.0
    %623 = vmatprep.subr.mxu0 0.0
    %624 = vmatpush1.msra.mxu0 0.0
    %625 = vmatprep.subr.mxu0 0.0
    %626 = vmatpush1.msra.mxu0 0.0
    %627 = vmatprep.subr.mxu0 0.0
    %628 = vmatpush1.msra.mxu0 0.0
    %629 = vmatprep.subr.mxu0 0.0
    %630 = vmatpush1.msra.mxu0 0.0
    %631 = vmatprep.subr.mxu0 0.0
    %632 = vmatpush1.msra.mxu0 0.0
    %633 = vmatprep.subr.mxu0 0.0
    %634 = vmatpush1.msra.mxu0 0.0
    %635 = vmatprep.subr.mxu0 0.0
    %636 = vmatpush1.msra.mxu0 0.0
    %637 = vmatprep.subr.mxu0 0.0
    %638 = vmatpush1.msra.mxu0 0.0
    %639 = vmatprep.subr.mxu0 0.0
    %640 = vmatpush1.msra.mxu0 0.0
    %641 = vmatprep.subr.mxu0 0.0
    %642 = vmatpush1.msra.mxu0 0.0
    %643 = vmatprep.subr.mxu0 0.0
    %644 = vmatpush1.msra.mxu0 0.0
    %645 = vmatprep.subr.mxu0 0.0
    %646 = vmatpush1.msra.mxu0 0.0
    %647 = vmatprep.mubr.f32.mxu0 0.0
    %648 = vmatmul.mubr.f32.gmra.mrb[0].mxu0 %v572
    %v649 = vpop.f32.mrb[0].mxu0
    %v650 = vadd.f32 %v570, %v649
    %v651 = vpop.f32.mrb[0].mxu0
    %652 = vmatprep.mubr.f32.mxu0 0.0
    %653 = vmatmul.mubr.f32.gmra.mrb[0].mxu0 %v575
    %v654 = vpop.f32.mrb[0].mxu0
    %v655 = vadd.f32 %v570, %v654
    %v656 = vpop.f32.mrb[0].mxu0
    %657 = vmatprep.mubr.f32.mxu0 0.0
    %658 = vmatmul.mubr.f32.gmra.mrb[0].mxu0 %v578
    %v659 = vpop.f32.mrb[0].mxu0
    %v660 = vadd.f32 %v570, %v659
    %v661 = vpop.f32.mrb[0].mxu0
    %662 = vmatprep.mubr.f32.mxu0 0.0
    %663 = vmatmul.mubr.f32.gmra.mrb[0].mxu0 %v581
    %v664 = vpop.f32.mrb[0].mxu0
    %v665 = vadd.f32 %v570, %v664
    %v666 = vpop.f32.mrb[0].mxu0
    %667 = vdwg.mxu0
    %v668 = vsel %vm49, %v650, -inf
    %669 = vmax.xlane.f32.xlu0 %v668
    %v670 = vpop.xlane.xlu0 %669
    %v671 = vsel %vm49, %v655, -inf
    %672 = vmax.xlane.f32.xlu0 %v671
    %v673 = vpop.xlane.xlu0 %672
    %v674 = vsel %vm49, %v660, -inf
    %675 = vmax.xlane.f32.xlu0 %v674
    %v676 = vpop.xlane.xlu0 %675
    %v677 = vsel %vm49, %v665, -inf
    %678 = vmax.xlane.f32.xlu0 %v677
    %v679 = vpop.xlane.xlu0 %678
    %v680 = vsub.f32 %v650, %v670
    %v681 = vsub.f32 %v655, %v673
    %v682 = vsub.f32 %v660, %v676
    %v683 = vsub.f32 %v665, %v679
    %v684 = vmul.f32 %v680, 1.442695
    %v685 = vpow.pop %v684
    %v686 = vmul.f32 %v681, 1.442695
    %v687 = vpow.pop %v686
    %v688 = vmul.f32 %v682, 1.442695
    %v689 = vpow.pop %v688
    %v690 = vmul.f32 %v683, 1.442695
    %v691 = vpow.pop %v690
    %v692 = vsel %vm49, %v685, 0.0
    %693 = vadd.xlane.f32.xlu0 %v692
    %v694 = vpop.xlane.xlu0 %693
    %v695 = vsel %vm49, %v687, 0.0
    %696 = vadd.xlane.f32.xlu0 %v695
    %v697 = vpop.xlane.xlu0 %696
    %v698 = vsel %vm49, %v689, 0.0
    %699 = vadd.xlane.f32.xlu0 %v698
    %v700 = vpop.xlane.xlu0 %699
    %v701 = vsel %vm49, %v691, 0.0
    %702 = vadd.xlane.f32.xlu0 %v701
    %v703 = vpop.xlane.xlu0 %702
    %v704 = vlog2.pop %v694
    %v705 = vmul.f32 %v704, 0.6931472
    %v706 = vlog2.pop %v697
    %v707 = vmul.f32 %v706, 0.6931472
    %v708 = vlog2.pop %v700
    %v709 = vmul.f32 %v708, 0.6931472
    %v710 = vlog2.pop %v703
    %v711 = vmul.f32 %v710, 0.6931472
    %v712 = vsub.f32 %v680, %v705
    %v713 = vsub.f32 %v681, %v707
    %v714 = vsub.f32 %v682, %v709
    %v715 = vsub.f32 %v683, %v711
    %716 = vst.msk [vmem:[%s5] sm:$0xff] %vm49, %v712
    %717 = vst.msk [vmem:[%s5 + $0x8] sm:$0xff] %vm49, %v713
    %718 = vst.msk [vmem:[%s5 + $0x10] sm:$0xff] %vm49, %v714
    %719 = vst.msk [vmem:[%s5 + $0x18] sm:$0xff] %vm49, %v715
    %v720 = vsel %vm49, %v563, 0.0
    %v721 = vrot.slane %v720, 4
    %v722 = vadd.f32 %v720, %v721
    %v723 = vrot.slane %v722, 2
    %v724 = vadd.f32 %v722, %v723
    %v725 = vrot.slane %v724, 1
    %v726 = vadd.f32 %v724, %v725
    %v727 = vsel %vm49, %v564, 0.0
    %v728 = vrot.slane %v727, 4
    %v729 = vadd.f32 %v727, %v728
    %v730 = vrot.slane %v729, 2
    %v731 = vadd.f32 %v729, %v730
    %v732 = vrot.slane %v731, 1
    %v733 = vadd.f32 %v731, %v732
    %v734 = vsel %vm49, %v565, 0.0
    %v735 = vrot.slane %v734, 4
    %v736 = vadd.f32 %v734, %v735
    %v737 = vrot.slane %v736, 2
    %v738 = vadd.f32 %v736, %v737
    %v739 = vrot.slane %v738, 1
    %v740 = vadd.f32 %v738, %v739
    %v741 = vsel %vm49, %v566, 0.0
    %v742 = vrot.slane %v741, 4
    %v743 = vadd.f32 %v741, %v742
    %v744 = vrot.slane %v743, 2
    %v745 = vadd.f32 %v743, %v744
    %v746 = vrot.slane %v745, 1
    %v747 = vadd.f32 %v745, %v746
    %vm750 = vcmask 1041409
    %v751 = vsel %vm750, %v733, %v726
    %v755 = vsel %vm750, %v747, %v740
    %756 = vrot.lane.b32.xlu0 %v755, 32
    %v757 = vpop.permute.xlu0 %756
    %v759 = vsel %vm49, %v751, %v757
    %v760 = vlaneseq
    %v761 = vshrl.u32 %v760, 7
    %v762 = vsub.s32 0, %v761
    %v763 = vrot.slane %v44, %v762
    %vm764 = vcmask 523264
    %v766 = vsel %vm764, %v759, 0
    %768 = vmatprep.subr.mxu0 0.0
    %769 = vmatpush1.msra.mxu0 %v35
    %770 = vmatprep.subr.mxu0 0.0
    %771 = vmatpush1.msra.mxu0 %v36
    %772 = vmatprep.subr.mxu0 0.0
    %773 = vmatpush1.msra.mxu0 %v37
    %774 = vmatprep.subr.mxu0 0.0
    %775 = vmatpush1.msra.mxu0 %v38
    %776 = vmatprep.subr.mxu0 0.0
    %777 = vmatpush1.msra.mxu0 %v39
    %778 = vmatprep.subr.mxu0 0.0
    %779 = vmatpush1.msra.mxu0 %v40
    %780 = vmatprep.subr.mxu0 0.0
    %781 = vmatpush1.msra.mxu0 %v41
    %782 = vmatprep.subr.mxu0 0.0
    %783 = vmatpush1.msra.mxu0 %v42
    %784 = vmatprep.subr.mxu0 0.0
    %785 = vmatpush1.msra.mxu0 0.0
    %786 = vmatprep.subr.mxu0 0.0
    %787 = vmatpush1.msra.mxu0 0.0
    %788 = vmatprep.subr.mxu0 0.0
    %789 = vmatpush1.msra.mxu0 0.0
    %790 = vmatprep.subr.mxu0 0.0
    %791 = vmatpush1.msra.mxu0 0.0
    %792 = vmatprep.subr.mxu0 0.0
    %793 = vmatpush1.msra.mxu0 0.0
    %794 = vmatprep.subr.mxu0 0.0
    %795 = vmatpush1.msra.mxu0 0.0
    %796 = vmatprep.subr.mxu0 0.0
    %797 = vmatpush1.msra.mxu0 0.0
    %798 = vmatprep.subr.mxu0 0.0
    %799 = vmatpush1.msra.mxu0 0.0
    %800 = vmatprep.subr.mxu0 0.0
    %801 = vmatpush1.msra.mxu0 0.0
    %802 = vmatprep.subr.mxu0 0.0
    %803 = vmatpush1.msra.mxu0 0.0
    %804 = vmatprep.subr.mxu0 0.0
    %805 = vmatpush1.msra.mxu0 0.0
    %806 = vmatprep.subr.mxu0 0.0
    %807 = vmatpush1.msra.mxu0 0.0
    %808 = vmatprep.subr.mxu0 0.0
    %809 = vmatpush1.msra.mxu0 0.0
    %810 = vmatprep.subr.mxu0 0.0
    %811 = vmatpush1.msra.mxu0 0.0
    %812 = vmatprep.subr.mxu0 0.0
    %813 = vmatpush1.msra.mxu0 0.0
    %814 = vmatprep.subr.mxu0 0.0
    %815 = vmatpush1.msra.mxu0 0.0
    %816 = vmatprep.subr.mxu0 0.0
    %817 = vmatpush1.msra.mxu0 0.0
    %818 = vmatprep.subr.mxu0 0.0
    %819 = vmatpush1.msra.mxu0 0.0
    %820 = vmatprep.subr.mxu0 0.0
    %821 = vmatpush1.msra.mxu0 0.0
    %822 = vmatprep.subr.mxu0 0.0
    %823 = vmatpush1.msra.mxu0 0.0
    %824 = vmatprep.subr.mxu0 0.0
    %825 = vmatpush1.msra.mxu0 0.0
    %826 = vmatprep.subr.mxu0 0.0
    %827 = vmatpush1.msra.mxu0 0.0
    %828 = vmatprep.subr.mxu0 0.0
    %829 = vmatpush1.msra.mxu0 0.0
    %830 = vmatprep.subr.mxu0 0.0
    %831 = vmatpush1.msra.mxu0 0.0
    %832 = vmatprep.mubr.f32.mxu0 0.0
    %833 = vmatmul.mubr.f32.gmra.mrb[0].mxu0 %v766
    %v834 = vpop.f32.mrb[0].mxu0
    %v835 = vadd.f32 %v763, %v834
    %v836 = vpop.f32.mrb[0].mxu0
    %837 = vdwg.mxu0
    %vm838 = vcmask 9216
    %v839 = vsel %vm838, %v835, -inf
    %840 = vmax.xlane.f32.xlu0 %v839
    %v841 = vpop.xlane.xlu0 %840
    %v842 = vsub.f32 %v835, %v841
    %v843 = vmul.f32 %v842, 1.442695
    %v844 = vpow.pop %v843
    %v845 = vsel %vm838, %v844, 0.0
    %846 = vadd.xlane.f32.xlu0 %v845
    %v847 = vpop.xlane.xlu0 %846
    %v848 = vlog2.pop %v847
    %v849 = vmul.f32 %v848, 0.6931472
    %v850 = vsub.f32 %v842, %v849
    %851 = vst.msk [vmem:[#allocation2] sm:$0x3] %vm838, %v850
    // Predicated region
    $region22: #{molgraph2_forward.1} parent=1 // pred_check
      _
    $region23: #{molgraph2_forward.1} parent=1 // pred_check_branch
      %853 = sbr.rel (0) target = $region25
    $region24: #{molgraph2_forward.1} parent=1 // pred_region
      _
    $region25: #{molgraph2_forward.1} parent=1 // pred_fallthru
      _
    // Predicated region
    $region26: #{molgraph2_forward.1} parent=1 // pred_check
      _
    $region27: #{molgraph2_forward.1} parent=1 // pred_check_branch
      %855 = sbr.rel (0) target = $region29
    $region28: #{molgraph2_forward.1} parent=1 // pred_region
      %s857 = ssub.s32 32, 32
      %858 = vsyncadd [#allocation3], %s857
      %s860 = sshll.u32 [#allocation2], 4
      %s861 = int_to_ptr.vmem [resolvable:$true] %s860
      %863 = dma.vmem_to_hbm [thread:$0]  %s861, 32, %s6, [#allocation3]
    $region29: #{molgraph2_forward.1} parent=1 // pred_fallthru
      _
    // Predicated region
    $region30: #{molgraph2_forward.1} parent=1 // pred_check
      _
    $region31: #{molgraph2_forward.1} parent=1 // pred_check_branch
      %865 = sbr.rel (0) target = $region33
    $region32: #{molgraph2_forward.1} parent=1 // pred_region
      _
    $region33: #{molgraph2_forward.1} parent=1 // pred_fallthru
      _
    // Predicated region
    $region34: #{molgraph2_forward.1} parent=1 // pred_check
      _
    $region35: #{molgraph2_forward.1} parent=1 // pred_check_branch
      %867 = sbr.rel (0) target = $region37
    $region36: #{molgraph2_forward.1} parent=1 // pred_region
      %868 = dma.done [#allocation3], 32
    $region37: #{molgraph2_forward.1} parent=1 // pred_fallthru
      _
    %869 = vsyncpa [#allocation3], 1

</llo_original>
